<compile_context>
chip_gen: v6e
topology: v6e:2x2x1
jax: 0.10.0
libtpu: 0.0.40
codegen_flags: <defaults>
</compile_context>

<pallas_src>
import numpy as np

import jax
import jax.numpy as jnp
from jax.experimental import pallas as pl
from jax.experimental.pallas import tpu as pltpu


# ----------------------------------------------------------------------------
# pltpu.roll direction probe (makes the stencil shifts convention-proof)
# ----------------------------------------------------------------------------
_ROLL_MATCHES_NUMPY = True   # pltpu.roll(x, s, axis)[i] == x[(i - s) % n]


def _roll_probe_kernel(x_ref, o_ref):
    o_ref[...] = pltpu.roll(x_ref[...], shift=1, axis=0)


def detect_roll_convention():
    """One tiny 8x128 probe kernel pinning pltpu.roll's rotation direction."""
    global _ROLL_MATCHES_NUMPY
    x = jnp.tile(jnp.arange(8, dtype=jnp.float32).reshape(8, 1), (1, 128))
    y = pl.pallas_call(
        _roll_probe_kernel,
        out_shape=jax.ShapeDtypeStruct((8, 128), jnp.float32),
    )(x)
    _ROLL_MATCHES_NUMPY = bool(float(y[1, 0]) == 0.0)


# ----------------------------------------------------------------------------
# In-kernel math helpers (all lower to VPU/EUP/MXU-friendly ops)
# ----------------------------------------------------------------------------
_SQRT_HALF = 0.7071067811865476


def _erf(x):
    # Abramowitz & Stegun 7.1.26, |err| <= 1.5e-7 (float32 noise level).
    # Avoids depending on an erf lowering inside Mosaic while staying
    # numerically faithful to PyTorch's exact (erf-based) nn.GELU().
    p = 0.3275911
    a1, a2, a3, a4, a5 = (0.254829592, -0.284496736, 1.421413741,
                          -1.453152027, 1.061405429)
    ax = jnp.abs(x)
    t = 1.0 / (1.0 + p * ax)
    poly = t * (a1 + t * (a2 + t * (a3 + t * (a4 + t * a5))))
    y = 1.0 - poly * jnp.exp(-ax * ax)
    return jnp.where(x >= 0.0, y, -y)


def _gelu(x):
    return 0.5 * x * (1.0 + _erf(x * _SQRT_HALF))


def _sigmoid(x):
    return 1.0 / (1.0 + jnp.exp(-x))


def _batchnorm(h, gamma, beta, eps=1e-5):
    # Training-mode BatchNorm1d: biased batch statistics over (batch, length),
    # i.e. over all rows of the (B*L, C) slab.
    mean = jnp.mean(h, axis=0, keepdims=True)
    var = jnp.mean(jnp.square(h - mean), axis=0, keepdims=True)
    return (h - mean) * jax.lax.rsqrt(var + eps) * gamma + beta


def _shift_down(x, not_first):
    """Row i of the result holds x[i-1]; rows at segment starts are zeroed
    (emulates the left zero-pad of a size-3 / pad-1 conv, per sample)."""
    n = x.shape[0]
    s = 1 if _ROLL_MATCHES_NUMPY else n - 1
    return pltpu.roll(x, shift=s, axis=0) * not_first


def _shift_up(x, not_last):
    """Row i of the result holds x[i+1]; rows at segment ends are zeroed."""
    n = x.shape[0]
    s = n - 1 if _ROLL_MATCHES_NUMPY else 1
    return pltpu.roll(x, shift=s, axis=0) * not_last


# ----------------------------------------------------------------------------
# Pallas kernels (whole-array single-shot; everything fits VMEM at these sizes)
# ----------------------------------------------------------------------------
def _conv3_bn_gelu_kernel(x_ref, nf_ref, nl_ref, w_ref, b_ref, g_ref, bt_ref,
                          o_ref):
    """Conv1d(k=3, s=1, pad=1) + bias + BatchNorm(batch stats) + exact GELU.
    x: (B*L, Cin), w: (3, Cin, Cout) with w[k][ci, co] = w_pt[co, ci, k]."""
    x = x_ref[...]
    xp = _shift_down(x, nf_ref[...])
    xn = _shift_up(x, nl_ref[...])
    h = (jnp.dot(xp, w_ref[0], preferred_element_type=jnp.float32)
         + jnp.dot(x, w_ref[1], preferred_element_type=jnp.float32)
         + jnp.dot(xn, w_ref[2], preferred_element_type=jnp.float32)
         + b_ref[...])
    o_ref[...] = _gelu(_batchnorm(h, g_ref[...], bt_ref[...]))


def _resblock_kernel(x_ref, nf_ref, nl_ref, pool_ref, expand_ref,
                     aw1_ref, ab1_ref, aw2_ref, ab2_ref,
                     dw1_ref, db1_ref, pw1_ref, pb1_ref, g1_ref, bt1_ref,
                     dw2_ref, db2_ref, pw2_ref, pb2_ref, g2_ref, bt2_ref,
                     o_ref):
    """Fused ResidualBlock: channel attention (avgpool->1x1->GELU->1x1->sigmoid)
    + 2x depthwise-separable conv + 2x BatchNorm + GELU + residual add."""
    x = x_ref[...]                               # (B*L, C)
    nf = nf_ref[...]
    nl = nl_ref[...]

    # ---- channel attention (on the block input, as in PyTorch) ----
    pooled = jnp.dot(pool_ref[...], x, preferred_element_type=jnp.float32)   # (B, C)
    a = _gelu(jnp.dot(pooled, aw1_ref[...],
                      preferred_element_type=jnp.float32) + ab1_ref[...])
    attn = _sigmoid(jnp.dot(a, aw2_ref[...],
                            preferred_element_type=jnp.float32) + ab2_ref[...])
    attn_rows = jnp.dot(expand_ref[...], attn,
                        preferred_element_type=jnp.float32)                  # (B*L, C)

    # ---- depthwise(k=3, pad=1) + pointwise(1x1) helper ----
    def dsconv(v, dw_ref, db_ref, pw_ref, pb_ref):
        d = (_shift_down(v, nf) * dw_ref[0]
             + v * dw_ref[1]
             + _shift_up(v, nl) * dw_ref[2]
             + db_ref[...])
        return jnp.dot(d, pw_ref[...],
                       preferred_element_type=jnp.float32) + pb_ref[...]

    h = dsconv(x, dw1_ref, db1_ref, pw1_ref, pb1_ref)
    h = _gelu(_batchnorm(h, g1_ref[...], bt1_ref[...]))
    h = dsconv(h, dw2_ref, db2_ref, pw2_ref, pb2_ref)
    h = _batchnorm(h, g2_ref[...], bt2_ref[...])

    o_ref[...] = x + h * attn_rows


def _vae_head_kernel(flat_ref, eps_ref, wmu_ref, bmu_ref, wvar_ref, bvar_ref,
                     wdec_ref, bdec_ref, mu_ref, lv_ref, dec_ref):
    """fc_mu, fc_var, reparameterization and the decoder Linear in one kernel."""
    flat = flat_ref[...]
    mu = jnp.dot(flat, wmu_ref[...],
                 preferred_element_type=jnp.float32) + bmu_ref[...]
    lv = jnp.dot(flat, wvar_ref[...],
                 preferred_element_type=jnp.float32) + bvar_ref[...]
    z = mu + eps_ref[...] * jnp.exp(0.5 * lv)
    dec_ref[...] = jnp.dot(z, wdec_ref[...],
                           preferred_element_type=jnp.float32) + bdec_ref[...]
    mu_ref[...] = mu
    lv_ref[...] = lv


def _ct_bn_gelu_kernel(x_ref, nl_ref, w_ref, b_ref, g_ref, bt_ref,
                       ye_ref, yo_ref):
    """Polyphase ConvTranspose1d(k=3, s=2, p=1, op=1) + BatchNorm + GELU.
    y_even[m] = x[m] @ W1 + b ;  y_odd[m] = x[m] @ W2 + x[m+1] @ W0 + b."""
    x = x_ref[...]
    xn = _shift_up(x, nl_ref[...])
    b = b_ref[...]
    ye = jnp.dot(x, w_ref[1], preferred_element_type=jnp.float32) + b
    yo = (jnp.dot(x, w_ref[2], preferred_element_type=jnp.float32)
          + jnp.dot(xn, w_ref[0], preferred_element_type=jnp.float32) + b)
    # BatchNorm statistics over BOTH output phases (= all 2L positions).
    n = 2.0 * x.shape[0]
    mean = (jnp.sum(ye, axis=0, keepdims=True)
            + jnp.sum(yo, axis=0, keepdims=True)) / n
    var = (jnp.sum(jnp.square(ye - mean), axis=0, keepdims=True)
           + jnp.sum(jnp.square(yo - mean), axis=0, keepdims=True)) / n
    inv = jax.lax.rsqrt(var + 1e-5)
    g = g_ref[...]
    bt = bt_ref[...]
    ye_ref[...] = _gelu((ye - mean) * inv * g + bt)
    yo_ref[...] = _gelu((yo - mean) * inv * g + bt)


def _ct_plain_kernel(x_ref, nl_ref, w_ref, b_ref, ye_ref, yo_ref):
    """Polyphase ConvTranspose1d without BN/GELU (final reconstruction layer)."""
    x = x_ref[...]
    xn = _shift_up(x, nl_ref[...])
    b = b_ref[...]
    ye_ref[...] = jnp.dot(x, w_ref[1], preferred_element_type=jnp.float32) + b
    yo_ref[...] = (jnp.dot(x, w_ref[2], preferred_element_type=jnp.float32)
                   + jnp.dot(xn, w_ref[0],
                             preferred_element_type=jnp.float32) + b)


# ----------------------------------------------------------------------------
# Constant helpers (baked as XLA constants under jit)
# ----------------------------------------------------------------------------
def _not_first_mask(B, L):
    m = np.ones((B * L, 1), np.float32)
    m[0::L] = 0.0
    return jnp.asarray(m)


def _not_last_mask(B, L):
    m = np.ones((B * L, 1), np.float32)
    m[L - 1::L] = 0.0
    return jnp.asarray(m)


def _pool_matrix(B, L):            # (B, B*L): per-sample average over length
    p = np.zeros((B, B * L), np.float32)
    for b in range(B):
        p[b, b * L:(b + 1) * L] = 1.0 / L
    return jnp.asarray(p)


def _expand_matrix(B, L):          # (B*L, B): broadcast per-sample attention
    e = np.zeros((B * L, B), np.float32)
    for b in range(B):
        e[b * L:(b + 1) * L, b] = 1.0
    return jnp.asarray(e)


# ----------------------------------------------------------------------------
# Layer wrappers
# ----------------------------------------------------------------------------
def conv3_bn_gelu(x2d, B, L, w, b, g, beta):
    BL = x2d.shape[0]
    Cout = w.shape[2]
    return pl.pallas_call(
        _conv3_bn_gelu_kernel,
        out_shape=jax.ShapeDtypeStruct((BL, Cout), jnp.float32),
    )(x2d, _not_first_mask(B, L), _not_last_mask(B, L), w, b, g, beta)


def residual_block(x2d, B, L, p):
    BL, C = x2d.shape
    return pl.pallas_call(
        _resblock_kernel,
        out_shape=jax.ShapeDtypeStruct((BL, C), jnp.float32),
    )(x2d, _not_first_mask(B, L), _not_last_mask(B, L),
      _pool_matrix(B, L), _expand_matrix(B, L),
      p['attn_w1'], p['attn_b1'], p['attn_w2'], p['attn_b2'],
      p['dw1_w'], p['dw1_b'], p['pw1_w'], p['pw1_b'], p['bn1_g'], p['bn1_b'],
      p['dw2_w'], p['dw2_b'], p['pw2_w'], p['pw2_b'], p['bn2_g'], p['bn2_b'])


def maxpool2(x2d, B, L):
    C = x2d.shape[1]
    return jnp.max(x2d.reshape(B, L // 2, 2, C), axis=2).reshape(B * (L // 2), C)


def _interleave(ye, yo, B, L, C):
    y = jnp.stack([ye.reshape(B, L, C), yo.reshape(B, L, C)], axis=2)
    return y.reshape(B * 2 * L, C)


def conv_transpose_bn_gelu(x2d, B, L, w, b, g, beta):
    BL = x2d.shape[0]
    Cout = w.shape[2]
    ye, yo = pl.pallas_call(
        _ct_bn_gelu_kernel,
        out_shape=(jax.ShapeDtypeStruct((BL, Cout), jnp.float32),
                   jax.ShapeDtypeStruct((BL, Cout), jnp.float32)),
    )(x2d, _not_last_mask(B, L), w, b, g, beta)
    return _interleave(ye, yo, B, L, Cout)


def conv_transpose_plain(x2d, B, L, w, b):
    BL = x2d.shape[0]
    Cout = w.shape[2]
    ye, yo = pl.pallas_call(
        _ct_plain_kernel,
        out_shape=(jax.ShapeDtypeStruct((BL, Cout), jnp.float32),
                   jax.ShapeDtypeStruct((BL, Cout), jnp.float32)),
    )(x2d, _not_last_mask(B, L), w, b)
    return _interleave(ye, yo, B, L, Cout)


def vae_head(h2d, eps, B, L, p):
    C = h2d.shape[1]
    flat = h2d.reshape(B, L * C)           # channels-last flatten (perm folded into weights)
    latent = p['fc_mu_w'].shape[1]
    D = p['dec_fc_w'].shape[1]
    mu, logvar, dec = pl.pallas_call(
        _vae_head_kernel,
        out_shape=(jax.ShapeDtypeStruct((B, latent), jnp.float32),
                   jax.ShapeDtypeStruct((B, latent), jnp.float32),
                   jax.ShapeDtypeStruct((B, D), jnp.float32)),
    )(flat, eps, p['fc_mu_w'], p['fc_mu_b'], p['fc_var_w'], p['fc_var_b'],
      p['dec_fc_w'], p['dec_fc_b'])
    return mu, logvar, dec.reshape(B * L, C)


# ----------------------------------------------------------------------------
# Forward pass
# ----------------------------------------------------------------------------
def denoising_vae_forward(params, x_ncw, eps):
    p = params
    B, _, F = x_ncw.shape
    assert F % 8 == 0, "feature_length must be divisible by 8"
    L = F
    # NCW -> channels-last (B*L, 1)
    h = jnp.transpose(x_ncw, (0, 2, 1)).reshape(B * L, 1)

    # ------------------------------ encoder ------------------------------
    h = conv3_bn_gelu(h, B, L, p['enc1_w'], p['enc1_b'], p['enc1_g'], p['enc1_beta'])
    h = maxpool2(h, B, L); L //= 2
    h = residual_block(h, B, L, p['enc_rb1a'])
    h = residual_block(h, B, L, p['enc_rb1b'])

    h = conv3_bn_gelu(h, B, L, p['enc2_w'], p['enc2_b'], p['enc2_g'], p['enc2_beta'])
    h = maxpool2(h, B, L); L //= 2
    h = residual_block(h, B, L, p['enc_rb2a'])
    h = residual_block(h, B, L, p['enc_rb2b'])

    h = conv3_bn_gelu(h, B, L, p['enc3_w'], p['enc3_b'], p['enc3_g'], p['enc3_beta'])
    h = maxpool2(h, B, L); L //= 2
    h = residual_block(h, B, L, p['enc_rb3a'])
    h = residual_block(h, B, L, p['enc_rb3b'])

    # ------------------------ VAE head (fused) ---------------------------
    mu, logvar, h = vae_head(h, eps, B, L, p)

    # ------------------------------ decoder ------------------------------
    h = residual_block(h, B, L, p['dec_rb3a'])
    h = residual_block(h, B, L, p['dec_rb3b'])
    h = conv_transpose_bn_gelu(h, B, L, p['dec_ct1_w'], p['dec_ct1_b'],
                               p['dec_ct1_g'], p['dec_ct1_beta'])
    L *= 2
    h = residual_block(h, B, L, p['dec_rb2a'])
    h = residual_block(h, B, L, p['dec_rb2b'])
    h = conv_transpose_bn_gelu(h, B, L, p['dec_ct2_w'], p['dec_ct2_b'],
                               p['dec_ct2_g'], p['dec_ct2_beta'])
    L *= 2
    h = residual_block(h, B, L, p['dec_rb1a'])
    h = residual_block(h, B, L, p['dec_rb1b'])
    h = conv_transpose_plain(h, B, L, p['dec_ct3_w'], p['dec_ct3_b'])
    L *= 2

    recon = jnp.transpose(h.reshape(B, L, 1), (0, 2, 1))     # back to NCW
    return recon, mu, logvar


# ----------------------------------------------------------------------------
# Parameters: PyTorch layouts -> one-time conversion to kernel layouts
# ----------------------------------------------------------------------------
def init_params(key, latent_dim, feature_length):
    """Synthetic parameters in the ORIGINAL PyTorch layouts / shapes."""
    counter = [0]

    def nxt(shape, scale=0.1):
        counter[0] += 1
        k = jax.random.fold_in(key, counter[0])
        return jax.random.normal(k, shape, jnp.float32) * scale

    def rb(c):
        return {
            'dw1_w': nxt((c, 1, 3)), 'dw1_b': nxt((c,)),
            'pw1_w': nxt((c, c, 1)), 'pw1_b': nxt((c,)),
            'bn1_g': jnp.ones((c,), jnp.float32), 'bn1_b': jnp.zeros((c,), jnp.float32),
            'dw2_w': nxt((c, 1, 3)), 'dw2_b': nxt((c,)),
            'pw2_w': nxt((c, c, 1)), 'pw2_b': nxt((c,)),
            'bn2_g': jnp.ones((c,), jnp.float32), 'bn2_b': jnp.zeros((c,), jnp.float32),
            'attn1_w': nxt((c // 8, c, 1)), 'attn1_b': nxt((c // 8,)),
            'attn2_w': nxt((c, c // 8, 1)), 'attn2_b': nxt((c,)),
        }

    D = 128 * (feature_length // 8)
    return {
        'enc1_w': nxt((32, 1, 3)), 'enc1_b': nxt((32,)),
        'enc_bn1_g': jnp.ones((32,), jnp.float32), 'enc_bn1_b': jnp.zeros((32,), jnp.float32),
        'enc_rb1a': rb(32), 'enc_rb1b': rb(32),
        'enc2_w': nxt((64, 32, 3)), 'enc2_b': nxt((64,)),
        'enc_bn2_g': jnp.ones((64,), jnp.float32), 'enc_bn2_b': jnp.zeros((64,), jnp.float32),
        'enc_rb2a': rb(64), 'enc_rb2b': rb(64),
        'enc3_w': nxt((128, 64, 3)), 'enc3_b': nxt((128,)),
        'enc_bn3_g': jnp.ones((128,), jnp.float32), 'enc_bn3_b': jnp.zeros((128,), jnp.float32),
        'enc_rb3a': rb(128), 'enc_rb3b': rb(128),
        'fc_mu_w': nxt((latent_dim, D)), 'fc_mu_b': nxt((latent_dim,)),
        'fc_var_w': nxt((latent_dim, D)), 'fc_var_b': nxt((latent_dim,)),
        'dec_fc_w': nxt((D, latent_dim)), 'dec_fc_b': nxt((D,)),
        'dec_rb3a': rb(128), 'dec_rb3b': rb(128),
        'dec_ct1_w': nxt((128, 64, 3)), 'dec_ct1_b': nxt((64,)),
        'dec_bn1_g': jnp.ones((64,), jnp.float32), 'dec_bn1_b': jnp.zeros((64,), jnp.float32),
        'dec_rb2a': rb(64), 'dec_rb2b': rb(64),
        'dec_ct2_w': nxt((64, 32, 3)), 'dec_ct2_b': nxt((32,)),
        'dec_bn2_g': jnp.ones((32,), jnp.float32), 'dec_bn2_b': jnp.zeros((32,), jnp.float32),
        'dec_rb1a': rb(32), 'dec_rb1b': rb(32),
        'dec_ct3_w': nxt((32, 1, 3)), 'dec_ct3_b': nxt((1,)),
    }


def prepare_params(pt, latent_dim, feature_length):
    """One-time conversion from PyTorch layouts to the lane-friendly layouts the
    kernels consume (channels-last weights; Flatten/View permutation folded
    into fc_mu / fc_var / decoder-Linear weights)."""
    Lf = feature_length // 8
    C = 128
    D = C * Lf

    def vec(v):
        return v.reshape(1, -1)

    def conv3(w, b):                       # (Cout, Cin, 3) -> (3, Cin, Cout)
        return jnp.transpose(w, (2, 1, 0)), vec(b)

    def ct3(w, b):                         # (Cin, Cout, 3) -> (3, Cin, Cout)
        return jnp.transpose(w, (2, 0, 1)), vec(b)

    def pw(w, b):                          # (Cout, Cin, 1) -> (Cin, Cout)
        return jnp.transpose(w[:, :, 0], (1, 0)), vec(b)

    def dw(w, b):                          # (C, 1, 3) -> (3, 1, C)
        return jnp.transpose(w, (2, 1, 0)), vec(b)

    def rb(q):
        dw1_w, dw1_b = dw(q['dw1_w'], q['dw1_b'])
        pw1_w, pw1_b = pw(q['pw1_w'], q['pw1_b'])
        dw2_w, dw2_b = dw(q['dw2_w'], q['dw2_b'])
        pw2_w, pw2_b = pw(q['pw2_w'], q['pw2_b'])
        a1_w, a1_b = pw(q['attn1_w'], q['attn1_b'])
        a2_w, a2_b = pw(q['attn2_w'], q['attn2_b'])
        return {'dw1_w': dw1_w, 'dw1_b': dw1_b, 'pw1_w': pw1_w, 'pw1_b': pw1_b,
                'bn1_g': vec(q['bn1_g']), 'bn1_b': vec(q['bn1_b']),
                'dw2_w': dw2_w, 'dw2_b': dw2_b, 'pw2_w': pw2_w, 'pw2_b': pw2_b,
                'bn2_g': vec(q['bn2_g']), 'bn2_b': vec(q['bn2_b']),
                'attn_w1': a1_w, 'attn_b1': a1_b, 'attn_w2': a2_w, 'attn_b2': a2_b}

    out = {}
    # encoder stage convs + BN
    w, b = conv3(pt['enc1_w'], pt['enc1_b'])
    out.update(enc1_w=w, enc1_b=b, enc1_g=vec(pt['enc_bn1_g']), enc1_beta=vec(pt['enc_bn1_b']))
    w, b = conv3(pt['enc2_w'], pt['enc2_b'])
    out.update(enc2_w=w, enc2_b=b, enc2_g=vec(pt['enc_bn2_g']), enc2_beta=vec(pt['enc_bn2_b']))
    w, b = conv3(pt['enc3_w'], pt['enc3_b'])
    out.update(enc3_w=w, enc3_b=b, enc3_g=vec(pt['enc_bn3_g']), enc3_beta=vec(pt['enc_bn3_b']))

    for name in ('enc_rb1a', 'enc_rb1b', 'enc_rb2a', 'enc_rb2b', 'enc_rb3a', 'enc_rb3b',
                 'dec_rb3a', 'dec_rb3b', 'dec_rb2a', 'dec_rb2b', 'dec_rb1a', 'dec_rb1b'):
        out[name] = rb(pt[name])

    # Flatten permutation: PyTorch flat index j = c*Lf + l ; kernels use i = l*C + c.
    wmu = jnp.transpose(pt['fc_mu_w'])                    # (D, latent), rows j
    out['fc_mu_w'] = wmu.reshape(C, Lf, latent_dim).transpose(1, 0, 2).reshape(D, latent_dim)
    out['fc_mu_b'] = vec(pt['fc_mu_b'])
    wvar = jnp.transpose(pt['fc_var_w'])
    out['fc_var_w'] = wvar.reshape(C, Lf, latent_dim).transpose(1, 0, 2).reshape(D, latent_dim)
    out['fc_var_b'] = vec(pt['fc_var_b'])
    wdec = jnp.transpose(pt['dec_fc_w'])                  # (latent, D), cols j
    out['dec_fc_w'] = wdec.reshape(latent_dim, C, Lf).transpose(0, 2, 1).reshape(latent_dim, D)
    out['dec_fc_b'] = pt['dec_fc_b'].reshape(C, Lf).transpose(1, 0).reshape(1, D)

    # decoder transposed convs + BN
    w, b = ct3(pt['dec_ct1_w'], pt['dec_ct1_b'])
    out.update(dec_ct1_w=w, dec_ct1_b=b, dec_ct1_g=vec(pt['dec_bn1_g']),
               dec_ct1_beta=vec(pt['dec_bn1_b']))
    w, b = ct3(pt['dec_ct2_w'], pt['dec_ct2_b'])
    out.update(dec_ct2_w=w, dec_ct2_b=b, dec_ct2_g=vec(pt['dec_bn2_g']),
               dec_ct2_beta=vec(pt['dec_bn2_b']))
    w, b = ct3(pt['dec_ct3_w'], pt['dec_ct3_b'])
    out.update(dec_ct3_w=w, dec_ct3_b=b)
    return out


# ----------------------------------------------------------------------------
# Main
# ----------------------------------------------------------------------------
if __name__ == "__main__":
    latent_dim = 32
    feature_length = 64        # small stand-in for the default 1024 (divisible by 8)
    batch = 2

    key = jax.random.PRNGKey(0)
    kx, kp, ke = jax.random.split(key, 3)
    x = jax.random.normal(kx, (batch, 1, feature_length), jnp.float32)   # NCW like PyTorch
    # TODO(synk): torch.randn_like noise for reparameterize is passed in explicitly.
    eps = jax.random.normal(ke, (batch, latent_dim), jnp.float32)

    pt_params = init_params(kp, latent_dim, feature_length)
    params = prepare_params(pt_params, latent_dim, feature_length)       # one-time weight prep

    detect_roll_convention()                                             # pin pltpu.roll direction

    fwd = jax.jit(denoising_vae_forward)
    recon, mu, logvar = fwd(params, x, eps)
    jax.block_until_ready((recon, mu, logvar))

    assert recon.shape == (batch, 1, feature_length), recon.shape
    assert mu.shape == (batch, latent_dim), mu.shape
    assert logvar.shape == (batch, latent_dim), logvar.shape
    assert bool(jnp.all(jnp.isfinite(recon)))
    assert bool(jnp.all(jnp.isfinite(mu)))
    assert bool(jnp.all(jnp.isfinite(logvar)))
    print("KERNEL_OK")
</pallas_src>

<mosaic_0001>
module attributes {stable_mosaic.version = 11 : i64} {
  func.func @_roll_probe_kernel(%arg0: memref<8x128xf32, #tpu.memory_space<vmem>>, %arg1: memref<8x128xf32, #tpu.memory_space<vmem>>) attributes {dimension_semantics = [], scalar_prefetch = 0 : i64, scratch_operands = 0 : i64, tpu.core_type = #tpu.core_type<tc>} {
    %c0 = arith.constant 0 : index
    %c0_0 = arith.constant 0 : index
    %0 = vector.load %arg0[%c0, %c0_0] : memref<8x128xf32, #tpu.memory_space<vmem>>, vector<8x128xf32>
    %c1_i32 = arith.constant 1 : i32
    %1 = tpu.dynamic_rotate %0 by %c1_i32 dim 0 : vector<8x128xf32>, i32 -> vector<8x128xf32>
    %c0_1 = arith.constant 0 : index
    %c0_2 = arith.constant 0 : index
    %2 = vector.load %arg1[%c0_1, %c0_2] : memref<8x128xf32, #tpu.memory_space<vmem>>, vector<8x128xf32>
    tpu.vector_store %arg1[%c0_1, %c0_2], %1 {strides = array<i32>} : memref<8x128xf32, #tpu.memory_space<vmem>>, vector<8x128xf32>,
    return
  }
}

</mosaic_0001>

<llo_original>
// kernel: tpu_custom_call.1
$region0: #{tpu_custom_call.1}
  #allocation0 [shape = 'u32[]', space=smem, size = 0x4, offset = 0x4, fixed_abs, tag = 'smem constant byte address 0x4 - core index']
  #allocation1 [shape = 'u32[144,128]{1,0:T(1,128)}', space=vmem, size = 0x12000, scoped, tag = 'internal scratch']
  %s0 = inlined_call_operand.hbm [shape: f32[8,128], index: 0, kind: input, shape index: {}]
  %s1 = inlined_call_operand.hbm [shape: f32[8,128], index: 1, kind: output, shape index: {}]
  %s2 = sld [smem:[#allocation0]]
  $region18: #{tpu_custom_call.1} parent=0
    _
  %s4 = ssub.s32 1, %s2
  %s5 = scalar_select 0, %s4, %s2
  $region1: #{tpu_custom_call.1} parent=0
    #allocation2 [shape = 'u8[4096]{0}', space=vmem, size = 0x1000, scoped, tag = 'input window, operand 0, single buffered']
    #allocation3 [shape = 's32[1]{0}', space=sflag, size = 0x4, scoped, tag = 'scoped memory for tpu_custom_call.1']
    #allocation4 [shape = 's32[1]{0}', space=sflag, size = 0x4, scoped, tag = 'scoped memory for tpu_custom_call.1']
    #allocation5 [shape = 'u8[4096]{0}', space=vmem, size = 0x1000, scoped, tag = 'output window, operand 0, single buffered']
    %6 = vsyncpa [#allocation3], 0
    %7 = vsyncpa [#allocation4], 0
    // Predicated region
    $region2: #{tpu_custom_call.1} parent=1 // pred_check
      _
    $region3: #{tpu_custom_call.1} parent=1 // pred_check_branch
      %9 = sbr.rel (0) target = $region5
    $region4: #{tpu_custom_call.1} parent=1 // pred_region
      %s11 = ssub.s32 128, 128
      %12 = vsyncadd [#allocation3], %s11
      %s14 = sshll.u32 [#allocation2], 4
      %s15 = int_to_ptr.vmem [resolvable:$true] %s14
      %17 = dma.hbm_to_vmem [thread:$0]  %s0, 128, %s15, [#allocation3]
    $region5: #{tpu_custom_call.1} parent=1 // pred_fallthru
      _
    // Predicated region
    $region6: #{tpu_custom_call.1} parent=1 // pred_check
      _
    $region7: #{tpu_custom_call.1} parent=1 // pred_check_branch
      %19 = sbr.rel (0) target = $region9
    $region8: #{tpu_custom_call.1} parent=1 // pred_region
      %20 = dma.done [#allocation3], 128
    $region9: #{tpu_custom_call.1} parent=1 // pred_fallthru
      _
    %v21 = vld [vmem:[#allocation2] sm:$0xff]
    %v22 = vrot.slane %v21, 7
    %23 = vst [vmem:[#allocation5] sm:$0xff] %v22
    // Predicated region
    $region10: #{tpu_custom_call.1} parent=1 // pred_check
      _
    $region11: #{tpu_custom_call.1} parent=1 // pred_check_branch
      %25 = sbr.rel (0) target = $region13
    $region12: #{tpu_custom_call.1} parent=1 // pred_region
      %s27 = ssub.s32 128, 128
      %28 = vsyncadd [#allocation4], %s27
      %s30 = sshll.u32 [#allocation5], 4
      %s31 = int_to_ptr.vmem [resolvable:$true] %s30
      %33 = dma.vmem_to_hbm [thread:$0]  %s31, 128, %s1, [#allocation4]
    $region13: #{tpu_custom_call.1} parent=1 // pred_fallthru
      _
    // Predicated region
    $region14: #{tpu_custom_call.1} parent=1 // pred_check
      _
    $region15: #{tpu_custom_call.1} parent=1 // pred_check_branch
      %35 = sbr.rel (0) target = $region17
    $region16: #{tpu_custom_call.1} parent=1 // pred_region
      %36 = dma.done [#allocation4], 128
    $region17: #{tpu_custom_call.1} parent=1 // pred_fallthru
      _
    %37 = vsyncpa [#allocation3], 1
    %38 = vsyncpa [#allocation4], 1

</llo_original>
